<compile_context>
chip_gen: v5e
topology: v5e:2x2
jax: 0.10.0
libtpu: 0.0.40
codegen_flags: <defaults>
</compile_context>

<pallas_src>
import functools

import numpy as np
import jax
import jax.numpy as jnp
from jax.experimental import pallas as pl
from jax.experimental.pallas import tpu as pltpu


# ----------------------------------------------------------------------------
# helpers
# ----------------------------------------------------------------------------

def _bilinear_matrix(in_size: int, out_size: int) -> np.ndarray:
    """(out_size, in_size) 1-D interpolation matrix, align_corners=True."""
    A = np.zeros((out_size, in_size), dtype=np.float32)
    if in_size == 1:
        A[:, 0] = 1.0
        return A
    scale = (in_size - 1) / (out_size - 1)
    for o in range(out_size):
        src = o * scale
        i0 = min(int(np.floor(src)), in_size - 1)
        i1 = min(i0 + 1, in_size - 1)
        w1 = src - i0
        A[o, i0] += 1.0 - w1
        A[o, i1] += w1
    return A


def _vmem_limit_bytes(per_step_bytes: int) -> int:
    """~2x the per-step block footprint, clamped to a safe range."""
    return int(min(32 * 1024 * 1024, max(8 * 1024 * 1024, 2 * per_step_bytes)))


def _pick_cb(nc: int, h: int, w: int) -> int:
    """Channels per grid step for the bilinear path.

    Largest divisor of N*C such that (a) the unrolled per-channel height loop
    stays short (<=32), (b) the double-buffered in+out blocks stay within a
    ~8 MiB budget, and (c) the grid keeps >=2 parallel steps (v7x megacore).
    """
    budget_elems = (8 * 1024 * 1024) // 40  # ~8 MiB of double-buffered f32 blocks
    best = 1
    for d in range(1, min(nc, 32) + 1):
        if nc % d:
            continue
        if nc >= 2 and nc // d < 2:   # keep G >= 2 so both v7x TCs have work
            continue
        if d * h * w > budget_elems:
            continue
        best = d
    # TODO(synk): pad N*C up to a friendly multiple when it has no good divisor
    # (awkward prime NC currently degrades to CB=1).
    return best


def _pick_convt_tiles(h: int, w: int, cin: int, cout: int):
    """(TH, CHUNK, S) for the deconv path.

    CHUNK = TH*W (TH = smallest divisor of H with TH*W >= 128) keeps the
    scatter matmul lane-dense but narrow (low zero-multiply waste, important
    for v5e); S sub-chunks are processed per grid step to amortize the
    ~0.35us/step pipeline overhead with larger DMA blocks.
    """
    th = h
    for d in range(1, h + 1):
        if h % d == 0 and d * w >= 128:
            th = d
            break
    chunk = th * w
    rows = h // th
    budget = 12 * 1024 * 1024
    u_bytes = 2 * 4 * 4 * chunk * 4 * chunk        # double-buffered scatter mats
    per_sub = 2 * 4 * chunk * (cin + 4 * cout)     # double-buffered x + out per sub-chunk
    s = 1
    for cand in range(1, rows + 1):
        if rows % cand == 0 and cand <= 16 and cand * per_sub + u_bytes <= budget:
            s = cand
    return th, chunk, s


# ----------------------------------------------------------------------------
# Bilinear upsample (align_corners=True), scale_factor=2
# ----------------------------------------------------------------------------

def _bilinear_kernel(x_ref, awt_ref, ah_ref, o_ref, *, cb, h, ho):
    # x_ref block: (1, cb*h, W); awt: (W, Wo); ah: (ho, h); o_ref: (1, cb*ho, Wo)
    # Width pass: one matmul shared across the cb sublane-batched channels.
    xw = jnp.dot(x_ref[0], awt_ref[...],
                 preferred_element_type=jnp.float32)          # (cb*h, Wo)
    # Height pass: short unrolled per-channel loop of lane-dense dots.
    for c in range(cb):
        blk = jnp.dot(ah_ref[...], xw[c * h:(c + 1) * h, :],
                      preferred_element_type=jnp.float32)     # (ho, Wo)
        o_ref[0, c * ho:(c + 1) * ho, :] = blk.astype(o_ref.dtype)


def up_bilinear(x):
    """x: (N, C, H, W) float32 -> (N, C, 2H, 2W), bilinear, align_corners=True."""
    N, C, H, W = x.shape
    Ho, Wo = 2 * H, 2 * W
    NC = N * C
    CB = _pick_cb(NC, H, W)
    G = NC // CB

    ah = jnp.asarray(_bilinear_matrix(H, Ho))        # (Ho, H)
    awt = jnp.asarray(_bilinear_matrix(W, Wo).T)     # (W, Wo), pre-transposed on host

    # Free reshape (no data movement): channels fold onto the sublane axis.
    xp = x.reshape(G, CB * H, W)

    per_step = 2 * 4 * (CB * H * W + CB * Ho * Wo + H * Ho + W * Wo)
    flops = 2 * NC * H * W * Wo + 2 * NC * Ho * H * Wo
    bytes_accessed = 4 * (NC * H * W + NC * Ho * Wo + Ho * H + W * Wo)

    out = pl.pallas_call(
        functools.partial(_bilinear_kernel, cb=CB, h=H, ho=Ho),
        out_shape=jax.ShapeDtypeStruct((G, CB * Ho, Wo), x.dtype),
        grid_spec=pltpu.PrefetchScalarGridSpec(
            num_scalar_prefetch=0,
            grid=(G,),
            in_specs=[
                pl.BlockSpec((1, CB * H, W), lambda i: (i, 0, 0)),
                pl.BlockSpec((W, Wo), lambda i: (0, 0)),
                pl.BlockSpec((Ho, H), lambda i: (0, 0)),
            ],
            out_specs=pl.BlockSpec((1, CB * Ho, Wo), lambda i: (i, 0, 0)),
        ),
        compiler_params=pltpu.CompilerParams(
            dimension_semantics=("parallel",),
            vmem_limit_bytes=_vmem_limit_bytes(per_step)),
        cost_estimate=pl.CostEstimate(flops=flops, transcendentals=0,
                                      bytes_accessed=bytes_accessed),
    )(xp, awt, ah)

    # Free reshape back to NCHW.
    return out.reshape(N, C, Ho, Wo)


# ----------------------------------------------------------------------------
# ConvTranspose2d(in_ch, in_ch, kernel_size=2, stride=2)
# ----------------------------------------------------------------------------

def _convT_kernel(x_ref, w_ref, b_ref, u_ref, o_ref, *, s_sub, chunk):
    # x_ref: (1, Cin, s_sub*chunk); w_ref: (4, Cout, Cin); b_ref: (Cout, 1)
    # u_ref: (4, chunk, 4*chunk) exact 0/1 sub-pixel scatter matrices
    # o_ref: (1, Cout, 4*s_sub*chunk)  (flat NCHW output)
    b = b_ref[...]                                             # (Cout, 1)
    for s in range(s_sub):
        xs = x_ref[0, :, s * chunk:(s + 1) * chunk]            # (Cin, chunk)
        acc = None
        for idx in range(4):
            t = jnp.dot(w_ref[idx], xs,
                        preferred_element_type=jnp.float32)    # (Cout, chunk)
            part = jnp.dot(t, u_ref[idx],
                           preferred_element_type=jnp.float32)  # (Cout, 4*chunk)
            acc = part if acc is None else acc + part
        o_ref[0, :, s * 4 * chunk:(s + 1) * 4 * chunk] = (acc + b).astype(o_ref.dtype)


def up_conv_transpose(x, weight, bias):
    """x: (N, Cin, H, W); weight: (Cin, Cout, 2, 2); bias: (Cout,)."""
    N, Cin, H, W = x.shape
    _, Cout, kh, kw = weight.shape                 # kh = kw = 2
    TH, CHUNK, S = _pick_convt_tiles(H, W, Cin, Cout)
    rows_per_step = S * TH
    grid_h = H // rows_per_step

    # Per-subpixel-position transposed weights: (4, Cout, Cin); idx = 2*ki + kj.
    wT = jnp.stack([weight[:, :, ki, kj].T
                    for ki in range(kh) for kj in range(kw)], axis=0)
    b2 = bias.reshape(Cout, 1)

    # Exact 0/1 scatter matrices: (ih, iw) -> ih*4W + ki*2W + 2*iw + kj, i.e. the
    # flat NCHW index of output pixel (2*ih+ki, 2*iw+kj) within a TH-row chunk.
    U = np.zeros((kh * kw, CHUNK, 4 * CHUNK), np.float32)
    idx = 0
    for ki in range(kh):
        for kj in range(kw):
            for ih in range(TH):
                for iw in range(W):
                    U[idx, ih * W + iw, ih * 4 * W + ki * 2 * W + 2 * iw + kj] = 1.0
            idx += 1
    U = jnp.asarray(U)

    xv = x.reshape(N, Cin, H * W)                  # free reshape, no transpose

    per_step = (2 * 4 * (Cin * S * CHUNK + Cout * 4 * S * CHUNK)
                + 2 * 4 * (4 * CHUNK * 4 * CHUNK + 4 * Cout * Cin + Cout))
    flops = N * H * W * (8 * Cout * Cin + 32 * Cout * CHUNK)
    bytes_accessed = 4 * (N * Cin * H * W + 4 * N * Cout * H * W
                          + 4 * Cout * Cin + 4 * CHUNK * 4 * CHUNK + Cout)

    out = pl.pallas_call(
        functools.partial(_convT_kernel, s_sub=S, chunk=CHUNK),
        out_shape=jax.ShapeDtypeStruct((N, Cout, 4 * H * W), x.dtype),
        grid_spec=pltpu.PrefetchScalarGridSpec(
            num_scalar_prefetch=0,
            grid=(N, grid_h),
            in_specs=[
                pl.BlockSpec((1, Cin, S * CHUNK), lambda n, t: (n, 0, t)),
                pl.BlockSpec((kh * kw, Cout, Cin), lambda n, t: (0, 0, 0)),
                pl.BlockSpec((Cout, 1), lambda n, t: (0, 0)),
                pl.BlockSpec((kh * kw, CHUNK, 4 * CHUNK), lambda n, t: (0, 0, 0)),
            ],
            out_specs=pl.BlockSpec((1, Cout, 4 * S * CHUNK), lambda n, t: (n, 0, t)),
        ),
        compiler_params=pltpu.CompilerParams(
            dimension_semantics=("parallel", "parallel"),
            vmem_limit_bytes=_vmem_limit_bytes(per_step)),
        cost_estimate=pl.CostEstimate(flops=flops, transcendentals=0,
                                      bytes_accessed=bytes_accessed),
    )(xv, wT, b2, U)

    # Free reshape: the kernel already wrote flat NCHW order.
    return out.reshape(N, Cout, 2 * H, 2 * W)


# ----------------------------------------------------------------------------
# Module wrapper
# ----------------------------------------------------------------------------

class UpPallas:
    def __init__(self, in_ch, use_conv=False, key=None):
        self.use_conv = use_conv
        if use_conv:
            key = jax.random.PRNGKey(42) if key is None else key
            kw_, kb_ = jax.random.split(key)
            fan_in = in_ch * 2 * 2
            bound = 1.0 / np.sqrt(fan_in)
            # deterministic synthetic params, PyTorch-shaped: (Cin, Cout, 2, 2)
            self.weight = jax.random.uniform(kw_, (in_ch, in_ch, 2, 2),
                                             jnp.float32, -bound, bound)
            self.bias = jax.random.uniform(kb_, (in_ch,), jnp.float32,
                                           -bound, bound)

    def __call__(self, x):
        if self.use_conv:
            return up_conv_transpose(x, self.weight, self.bias)
        return up_bilinear(x)


if __name__ == "__main__":
    key = jax.random.PRNGKey(0)
    N, C, H, W = 2, 4, 16, 16
    x = jax.random.normal(key, (N, C, H, W), dtype=jnp.float32)

    # default path: bilinear upsample, align_corners=True
    up = UpPallas(C, use_conv=False)
    y = jax.block_until_ready(up(x))
    assert y.shape == (N, C, 2 * H, 2 * W)

    # reference check for the bilinear path (same separable formulation)
    ah = jnp.asarray(_bilinear_matrix(H, 2 * H))
    aw = jnp.asarray(_bilinear_matrix(W, 2 * W))
    y_ref = jnp.einsum('oh,nchw,pw->ncop', ah, x, aw,
                       precision=jax.lax.Precision.HIGHEST)
    np.testing.assert_allclose(np.asarray(y), np.asarray(y_ref),
                               rtol=1e-4, atol=1e-4)

    # use_conv=True path: ConvTranspose2d(C, C, 2, stride=2)
    up_c = UpPallas(C, use_conv=True, key=jax.random.PRNGKey(1))
    y_c = jax.block_until_ready(up_c(x))
    assert y_c.shape == (N, C, 2 * H, 2 * W)

    # reference check for the deconv path
    t = jnp.einsum('ncij,cdkl->ndikjl', x, up_c.weight,
                   precision=jax.lax.Precision.HIGHEST)
    y_c_ref = t.reshape(N, C, 2 * H, 2 * W) + up_c.bias[None, :, None, None]
    np.testing.assert_allclose(np.asarray(y_c), np.asarray(y_c_ref),
                               rtol=1e-4, atol=1e-4)

    print("KERNEL_OK")
</pallas_src>

<mosaic_0001>
module attributes {stable_mosaic.version = 11 : i64} {
  func.func @_bilinear_kernel(%arg0: i32, %arg1: memref<1x64x16xf32, #tpu.memory_space<vmem>>, %arg2: memref<16x32xf32, #tpu.memory_space<vmem>>, %arg3: memref<32x16xf32, #tpu.memory_space<vmem>>, %arg4: memref<1x128x32xf32, #tpu.memory_space<vmem>>) attributes {dimension_semantics = [#tpu.dimension_semantics<parallel>], iteration_bounds = array<i64: 2>, scalar_prefetch = 0 : i64, scratch_operands = 0 : i64, tpu.core_type = #tpu.core_type<tc>, window_params = [{transform_indices = @transform_0, window_bounds = array<i64: 1, 64, 16>}, {pipeline_mode = #tpu.pipeline_mode<synchronous>, transform_indices = @transform_1, window_bounds = array<i64: 16, 32>}, {pipeline_mode = #tpu.pipeline_mode<synchronous>, transform_indices = @transform_2, window_bounds = array<i64: 32, 16>}, {transform_indices = @transform_3, window_bounds = array<i64: 1, 128, 32>}]} {
    %c0 = arith.constant 0 : index
    %c0_0 = arith.constant 0 : index
    %c0_1 = arith.constant 0 : index
    %0 = vector.load %arg1[%c0, %c0_0, %c0_1] : memref<1x64x16xf32, #tpu.memory_space<vmem>>, vector<1x64x16xf32>
    %1 = vector.shape_cast %0 : vector<1x64x16xf32> to vector<64x16xf32>
    %c0_2 = arith.constant 0 : index
    %c0_3 = arith.constant 0 : index
    %2 = vector.load %arg2[%c0_2, %c0_3] : memref<16x32xf32, #tpu.memory_space<vmem>>, vector<16x32xf32>
    %cst = arith.constant dense<0.000000e+00> : vector<64x32xf32>
    %3 = tpu.matmul %1, %2, %cst {dimension_numbers = #tpu.dot_dimension_numbers<[1], [0], [0], [1], [0, 0, 1, 1], [], []>} : vector<64x16xf32>, vector<16x32xf32>, vector<64x32xf32> -> vector<64x32xf32>
    %c0_4 = arith.constant 0 : index
    %c0_5 = arith.constant 0 : index
    %4 = vector.load %arg3[%c0_4, %c0_5] : memref<32x16xf32, #tpu.memory_space<vmem>>, vector<32x16xf32>
    %5 = vector.extract_strided_slice %3 {offsets = [0, 0], sizes = [16, 32], strides = [1, 1]} : vector<64x32xf32> to vector<16x32xf32>
    %cst_6 = arith.constant dense<0.000000e+00> : vector<32x32xf32>
    %6 = tpu.matmul %4, %5, %cst_6 {dimension_numbers = #tpu.dot_dimension_numbers<[1], [0], [0], [1], [0, 0, 1, 1], [], []>} : vector<32x16xf32>, vector<16x32xf32>, vector<32x32xf32> -> vector<32x32xf32>
    %c0_7 = arith.constant 0 : index
    %c0_8 = arith.constant 0 : index
    %c0_9 = arith.constant 0 : index
    %7 = vector.load %arg4[%c0_7, %c0_8, %c0_9] : memref<1x128x32xf32, #tpu.memory_space<vmem>>, vector<1x32x32xf32>
    %8 = vector.shape_cast %7 : vector<1x32x32xf32> to vector<32x32xf32>
    %9 = vector.shape_cast %6 : vector<32x32xf32> to vector<1x32x32xf32>
    tpu.vector_store %arg4[%c0_7, %c0_8, %c0_9], %9 {strides = array<i32>} : memref<1x128x32xf32, #tpu.memory_space<vmem>>, vector<1x32x32xf32>,
    %c0_10 = arith.constant 0 : index
    %c0_11 = arith.constant 0 : index
    %10 = vector.load %arg3[%c0_10, %c0_11] : memref<32x16xf32, #tpu.memory_space<vmem>>, vector<32x16xf32>
    %11 = vector.extract_strided_slice %3 {offsets = [16, 0], sizes = [16, 32], strides = [1, 1]} : vector<64x32xf32> to vector<16x32xf32>
    %cst_12 = arith.constant dense<0.000000e+00> : vector<32x32xf32>
    %12 = tpu.matmul %10, %11, %cst_12 {dimension_numbers = #tpu.dot_dimension_numbers<[1], [0], [0], [1], [0, 0, 1, 1], [], []>} : vector<32x16xf32>, vector<16x32xf32>, vector<32x32xf32> -> vector<32x32xf32>
    %c0_13 = arith.constant 0 : index
    %c32 = arith.constant 32 : index
    %c0_14 = arith.constant 0 : index
    %13 = vector.load %arg4[%c0_13, %c32, %c0_14] : memref<1x128x32xf32, #tpu.memory_space<vmem>>, vector<1x32x32xf32>
    %14 = vector.shape_cast %13 : vector<1x32x32xf32> to vector<32x32xf32>
    %15 = vector.shape_cast %12 : vector<32x32xf32> to vector<1x32x32xf32>
    tpu.vector_store %arg4[%c0_13, %c32, %c0_14], %15 {strides = array<i32>} : memref<1x128x32xf32, #tpu.memory_space<vmem>>, vector<1x32x32xf32>,
    %c0_15 = arith.constant 0 : index
    %c0_16 = arith.constant 0 : index
    %16 = vector.load %arg3[%c0_15, %c0_16] : memref<32x16xf32, #tpu.memory_space<vmem>>, vector<32x16xf32>
    %17 = vector.extract_strided_slice %3 {offsets = [32, 0], sizes = [16, 32], strides = [1, 1]} : vector<64x32xf32> to vector<16x32xf32>
    %cst_17 = arith.constant dense<0.000000e+00> : vector<32x32xf32>
    %18 = tpu.matmul %16, %17, %cst_17 {dimension_numbers = #tpu.dot_dimension_numbers<[1], [0], [0], [1], [0, 0, 1, 1], [], []>} : vector<32x16xf32>, vector<16x32xf32>, vector<32x32xf32> -> vector<32x32xf32>
    %c0_18 = arith.constant 0 : index
    %c64 = arith.constant 64 : index
    %c0_19 = arith.constant 0 : index
    %19 = vector.load %arg4[%c0_18, %c64, %c0_19] : memref<1x128x32xf32, #tpu.memory_space<vmem>>, vector<1x32x32xf32>
    %20 = vector.shape_cast %19 : vector<1x32x32xf32> to vector<32x32xf32>
    %21 = vector.shape_cast %18 : vector<32x32xf32> to vector<1x32x32xf32>
    tpu.vector_store %arg4[%c0_18, %c64, %c0_19], %21 {strides = array<i32>} : memref<1x128x32xf32, #tpu.memory_space<vmem>>, vector<1x32x32xf32>,
    %c0_20 = arith.constant 0 : index
    %c0_21 = arith.constant 0 : index
    %22 = vector.load %arg3[%c0_20, %c0_21] : memref<32x16xf32, #tpu.memory_space<vmem>>, vector<32x16xf32>
    %23 = vector.extract_strided_slice %3 {offsets = [48, 0], sizes = [16, 32], strides = [1, 1]} : vector<64x32xf32> to vector<16x32xf32>
    %cst_22 = arith.constant dense<0.000000e+00> : vector<32x32xf32>
    %24 = tpu.matmul %22, %23, %cst_22 {dimension_numbers = #tpu.dot_dimension_numbers<[1], [0], [0], [1], [0, 0, 1, 1], [], []>} : vector<32x16xf32>, vector<16x32xf32>, vector<32x32xf32> -> vector<32x32xf32>
    %c0_23 = arith.constant 0 : index
    %c96 = arith.constant 96 : index
    %c0_24 = arith.constant 0 : index
    %25 = vector.load %arg4[%c0_23, %c96, %c0_24] : memref<1x128x32xf32, #tpu.memory_space<vmem>>, vector<1x32x32xf32>
    %26 = vector.shape_cast %25 : vector<1x32x32xf32> to vector<32x32xf32>
    %27 = vector.shape_cast %24 : vector<32x32xf32> to vector<1x32x32xf32>
    tpu.vector_store %arg4[%c0_23, %c96, %c0_24], %27 {strides = array<i32>} : memref<1x128x32xf32, #tpu.memory_space<vmem>>, vector<1x32x32xf32>,
    return
  }
  func.func @transform_0(%arg0: i32) -> (i32, i32, i32) {
    %c0_i32 = arith.constant 0 : i32
    %c0_i32_0 = arith.constant 0 : i32
    %c0_i32_1 = arith.constant 0 : i32
    return %arg0, %c0_i32, %c0_i32_0 : i32, i32, i32
  }
  func.func @transform_1(%arg0: i32) -> (i32, i32) {
    %c0_i32 = arith.constant 0 : i32
    %c0_i32_0 = arith.constant 0 : i32
    %c0_i32_1 = arith.constant 0 : i32
    return %c0_i32, %c0_i32_0 : i32, i32
  }
  func.func @transform_2(%arg0: i32) -> (i32, i32) {
    %c0_i32 = arith.constant 0 : i32
    %c0_i32_0 = arith.constant 0 : i32
    %c0_i32_1 = arith.constant 0 : i32
    return %c0_i32, %c0_i32_0 : i32, i32
  }
  func.func @transform_3(%arg0: i32) -> (i32, i32, i32) {
    %c0_i32 = arith.constant 0 : i32
    %c0_i32_0 = arith.constant 0 : i32
    %c0_i32_1 = arith.constant 0 : i32
    return %arg0, %c0_i32, %c0_i32_0 : i32, i32, i32
  }
}

</mosaic_0001>

<llo_original>
// kernel: tpu_custom_call.1
$region0: #{tpu_custom_call.1}
  #allocation0 [shape = 'u32[]', space=smem, size = 0x4, offset = 0x4, fixed_abs, tag = 'smem constant byte address 0x4 - core index']
  #allocation1 [shape = 'u32[72,128]{1,0:T(1,128)}', space=vmem, size = 0x9000, scoped, tag = 'internal scratch']
  %s0 = inlined_call_operand.vmem [shape: f32[2,64,16], index: 0, kind: input, shape index: {}]
  %s1 = inlined_call_operand.vmem [shape: f32[16,32], index: 1, kind: input, shape index: {}]
  %s2 = inlined_call_operand.vmem [shape: f32[32,16], index: 2, kind: input, shape index: {}]
  %s3 = inlined_call_operand.vmem [shape: f32[2,128,32], index: 3, kind: output, shape index: {}]
  %s4 = sld [smem:[#allocation0]]
  $region45: #{tpu_custom_call.1} parent=0
    _
  %s6 = ssub.s32 1, %s4
  %s7 = scalar_select 0, %s6, %s4
  loop: start=0, step=1, limit=4
  $region2: #{tpu_custom_call.1} parent=0 // loop_pre_header
    _
  $region3: #{tpu_custom_call.1} parent=0 // loop_header
    %s9 = sphi 0, %s13
    %p10 = scmp.ge.s32.totalorder %s9, 4
    %s19 = sphi 0, %s21
    %s22 = sphi 0, %s19
    %s23 = sphi 0, %s22
    %s39 = sphi 0, %s23
    %s43 = sphi 0, %s43
    %s45 = sphi 0, %s43
    %s46 = sphi 0, %s45
    %s60 = sphi 0, %s46
    %s64 = sphi 0, %s64
    %s66 = sphi 0, %s64
    %s67 = sphi 0, %s66
    %s81 = sphi 0, %s67
    %s87 = sphi 0, %s89
    %s90 = sphi 0, %s87
    %s91 = sphi 0, %s90
    %s107 = sphi 0, %s91
  $region4: #{tpu_custom_call.1} parent=0 // loop_header_branch
    %12 = sbr.rel (%p10) target = $region8
  $region5: #{tpu_custom_call.1} parent=0 // loop_body
    %s14 = ssub.s32 %s9, 1
    %s15 = ssub.s32 %s9, 2
    %s16 = sadd.s32 %s9, 1
    %s17 = ssub.s32 %s9, %s16
    %p18 = scmp.eq.s32.totalorder %s17, 0
    %s20 = sadd.s32 %s19, 1
    %s21 = scalar_select %p18, %s19, %s20
    %p24 = pneg %p18
    %p25 = scmp.eq.s32.totalorder %s9, 1
    %p26 = por %p24, %p25
    %p27 = scmp.ne.s32.totalorder %s19, %s22
    %p28 = scmp.eq.s32.totalorder %s9, 0
    %p29 = por %p27, %p28
    %p30 = scmp.ne.s32.totalorder %s19, %s22
    %p31 = scmp.eq.s32.totalorder %s14, 1
    %p32 = por %p30, %p31
    %p33 = scmp.ne.s32.totalorder %s22, %s23
    %p34 = scmp.eq.s32.totalorder %s14, 0
    %p35 = por %p33, %p34
    %p36 = scmp.ne.s32.totalorder %s22, %s23
    %p37 = scmp.eq.s32.totalorder %s15, 1
    %p38 = por %p36, %p37
    %p40 = scmp.ne.s32.totalorder %s23, %s39
    %p41 = scmp.eq.s32.totalorder %s15, 0
    %p42 = por %p40, %p41
    %s44 = sadd.s32 %s43, 1
    %p47 = scmp.eq.s32.totalorder %s9, 1
    %p48 = scmp.ne.s32.totalorder %s43, %s45
    %p49 = scmp.eq.s32.totalorder %s9, 0
    %p50 = por %p48, %p49
    %p51 = scmp.ne.s32.totalorder %s43, %s45
    %p52 = scmp.eq.s32.totalorder %s14, 1
    %p53 = por %p51, %p52
    %p54 = scmp.ne.s32.totalorder %s45, %s46
    %p55 = scmp.eq.s32.totalorder %s14, 0
    %p56 = por %p54, %p55
    %p57 = scmp.ne.s32.totalorder %s45, %s46
    %p58 = scmp.eq.s32.totalorder %s15, 1
    %p59 = por %p57, %p58
    %p61 = scmp.ne.s32.totalorder %s46, %s60
    %p62 = scmp.eq.s32.totalorder %s15, 0
    %p63 = por %p61, %p62
    %s65 = sadd.s32 %s64, 1
    %p68 = scmp.eq.s32.totalorder %s9, 1
    %p69 = scmp.ne.s32.totalorder %s64, %s66
    %p70 = scmp.eq.s32.totalorder %s9, 0
    %p71 = por %p69, %p70
    %p72 = scmp.ne.s32.totalorder %s64, %s66
    %p73 = scmp.eq.s32.totalorder %s14, 1
    %p74 = por %p72, %p73
    %p75 = scmp.ne.s32.totalorder %s66, %s67
    %p76 = scmp.eq.s32.totalorder %s14, 0
    %p77 = por %p75, %p76
    %p78 = scmp.ne.s32.totalorder %s66, %s67
    %p79 = scmp.eq.s32.totalorder %s15, 1
    %p80 = por %p78, %p79
    %p82 = scmp.ne.s32.totalorder %s67, %s81
    %p83 = scmp.eq.s32.totalorder %s15, 0
    %p84 = por %p82, %p83
    %s85 = ssub.s32 %s9, %s16
    %p86 = scmp.eq.s32.totalorder %s85, 0
    %s88 = sadd.s32 %s87, 1
    %s89 = scalar_select %p86, %s87, %s88
    %p92 = pneg %p86
    %p93 = scmp.eq.s32.totalorder %s9, 1
    %p94 = por %p92, %p93
    %p95 = scmp.ne.s32.totalorder %s87, %s90
    %p96 = scmp.eq.s32.totalorder %s9, 0
    %p97 = por %p95, %p96
    %p98 = scmp.ne.s32.totalorder %s87, %s90
    %p99 = scmp.eq.s32.totalorder %s14, 1
    %p100 = por %p98, %p99
    %p101 = scmp.ne.s32.totalorder %s90, %s91
    %p102 = scmp.eq.s32.totalorder %s14, 0
    %p103 = por %p101, %p102
    %p104 = scmp.ne.s32.totalorder %s90, %s91
    %p105 = scmp.eq.s32.totalorder %s15, 1
    %p106 = por %p104, %p105
    %p108 = scmp.ne.s32.totalorder %s91, %s107
    %p109 = scmp.eq.s32.totalorder %s15, 0
    %p110 = por %p108, %p109
    %p111 = scmp.le.s32.totalorder 1, %s9
    %p112 = scmp.lt.s32.totalorder %s9, 3
    %p113 = pnand %p111, %p112
    %p114 = pneg %p113
    // Predicated region
    $region9: #{tpu_custom_call.1} parent=5 // pred_check
      _
    $region10: #{tpu_custom_call.1} parent=5 // pred_check_branch
      %116 = sbr.rel (%p113) target = $region12
    $region11: #{tpu_custom_call.1} parent=5 // pred_region
      %s117 = ssub.s32 %s9, 1
      // Predicated region
      $region13: #{tpu_custom_call.1} parent=11 // pred_check
        %p118 = pneg %p56
      $region14: #{tpu_custom_call.1} parent=11 // pred_check_branch
        %120 = sbr.rel (%p118) target = $region16
      $region15: #{tpu_custom_call.1} parent=11 // pred_region
        _
      $region16: #{tpu_custom_call.1} parent=11 // pred_fallthru
        _
      // Predicated region
      $region17: #{tpu_custom_call.1} parent=11 // pred_check
        %p121 = pneg %p77
      $region18: #{tpu_custom_call.1} parent=11 // pred_check_branch
        %123 = sbr.rel (%p121) target = $region20
      $region19: #{tpu_custom_call.1} parent=11 // pred_region
        _
      $region20: #{tpu_custom_call.1} parent=11 // pred_fallthru
        _
    $region12: #{tpu_custom_call.1} parent=5 // pred_fallthru
      _
    %p124 = scmp.lt.s32.totalorder %s9, 2
    // Predicated region
    $region21: #{tpu_custom_call.1} parent=5 // pred_check
      %p125 = pneg %p124
    $region22: #{tpu_custom_call.1} parent=5 // pred_check_branch
      %127 = sbr.rel (%p125) target = $region24
    $region23: #{tpu_custom_call.1} parent=5 // pred_region
      // Predicated region
      $region25: #{tpu_custom_call.1} parent=23 // pred_check
        %p128 = pneg %p29
      $region26: #{tpu_custom_call.1} parent=23 // pred_check_branch
        %130 = sbr.rel (%p128) target = $region28
      $region27: #{tpu_custom_call.1} parent=23 // pred_region
        %p131 = scmp.lt.s32.totalorder %s9, 1
        %s132 = scalar_select %p131, %s9, 1
        %s133 = smul.addr %s132, 8
        %s134 = smul.addr %s133, 8
        %s135 = scalar_lea.vmem %s0, %s134
      $region28: #{tpu_custom_call.1} parent=23 // pred_fallthru
        _
    $region24: #{tpu_custom_call.1} parent=5 // pred_fallthru
      _
    %p136 = scmp.le.s32.totalorder 1, %s9
    %p137 = scmp.lt.s32.totalorder %s9, 3
    %p138 = pnand %p136, %p137
    %p139 = pneg %p138
    // Predicated region
    $region29: #{tpu_custom_call.1} parent=5 // pred_check
      _
    $region30: #{tpu_custom_call.1} parent=5 // pred_check_branch
      %141 = sbr.rel (%p138) target = $region32
    $region31: #{tpu_custom_call.1} parent=5 // pred_region
      %s142 = ssub.s32 %s9, 1
      %p143 = scmp.lt.s32.totalorder %s14, 1
      %s144 = scalar_select %p143, %s14, 1
      %s145 = smul.addr %s144, 8
      %s146 = smul.addr %s145, 8
      %s147 = scalar_lea.vmem %s0, %s146
      %p148 = pneg %p35
      %p149 = pneg %p32
      %p150 = pneg %p56
      %p151 = pneg %p53
      %p152 = pneg %p77
      %p153 = pneg %p74
      %p154 = pneg %p103
      %p155 = pneg %p100
      %p156 = scmp.lt.s32.totalorder %s14, 1
      %s157 = scalar_select %p156, %s14, 1
      %s158 = smul.addr %s157, 16
      %s159 = smul.addr %s158, 8
      %s160 = scalar_lea.vmem %s3, %s159
      %p161 = scmp.lt.s32.totalorder %s14, 1
      %s162 = scalar_select %p161, %s14, 1
      %s163 = smul.addr %s162, 8
      %s164 = smul.addr %s163, 8
      %s165 = scalar_lea.vmem %s0, %s164
      %p166 = scmp.lt.s32.totalorder %s14, 1
      %s167 = scalar_select %p166, %s14, 1
      %s168 = smul.addr %s167, 16
      %s169 = smul.addr %s168, 8
      %s170 = scalar_lea.vmem %s3, %s169
      %v171 = vld [vmem:[%s165] sm:$0xff]
      %v172 = vld [vmem:[%s165 + $0x8] sm:$0xff]
      %v173 = vld [vmem:[%s165 + $0x10] sm:$0xff]
      %v174 = vld [vmem:[%s165 + $0x18] sm:$0xff]
      %v175 = vld [vmem:[%s165 + $0x20] sm:$0xff]
      %v176 = vld [vmem:[%s165 + $0x28] sm:$0xff]
      %v177 = vld [vmem:[%s165 + $0x30] sm:$0xff]
      %v178 = vld [vmem:[%s165 + $0x38] sm:$0xff]
      %v179 = vld [vmem:[%s1] sm:$0xff]
      %v180 = vld [vmem:[%s1 + $0x8] sm:$0xff]
      %vm181 = vcmask 130048
      %v183 = vsel %vm181, %v171, 0
      %v186 = vsel %vm181, %v172, 0
      %v189 = vsel %vm181, %v173, 0
      %v192 = vsel %vm181, %v174, 0
      %v195 = vsel %vm181, %v175, 0
      %v198 = vsel %vm181, %v176, 0
      %v201 = vsel %vm181, %v177, 0
      %v204 = vsel %vm181, %v178, 0
      %206 = vmatpush.msra.mxu0 0.0
      %207 = vmatpush.msra.mxu0 0.0
      %208 = vmatpush.msra.mxu0 0.0
      %209 = vmatpush.msra.mxu0 0.0
      %210 = vmatpush.msra.mxu0 0.0
      %211 = vmatpush.msra.mxu0 0.0
      %212 = vmatpush.msra.mxu0 0.0
      %213 = vmatpush.msra.mxu0 0.0
      %214 = vmatpush.msra.mxu0 0.0
      %215 = vmatpush.msra.mxu0 0.0
      %216 = vmatpush.msra.mxu0 0.0
      %217 = vmatpush.msra.mxu0 0.0
      %218 = vmatpush.msra.mxu0 0.0
      %219 = vmatpush.msra.mxu0 0.0
      %220 = vmatpush.msra.mxu0 %v180
      %221 = vmatpush.msra.mxu0 %v179
      %222 = vmatmul.f32.gmra.mxu0 %v183
      %v223 = vpop.f32.mrf.mxu0
      %v224 = vadd.f32 0.0, %v223
      %225 = vmatmul.f32.gmra.mxu0 %v186
      %v226 = vpop.f32.mrf.mxu0
      %v227 = vadd.f32 0.0, %v226
      %228 = vmatmul.f32.gmra.mxu0 %v189
      %v229 = vpop.f32.mrf.mxu0
      %v230 = vadd.f32 0.0, %v229
      %231 = vmatmul.f32.gmra.mxu0 %v192
      %v232 = vpop.f32.mrf.mxu0
      %v233 = vadd.f32 0.0, %v232
      %234 = vmatmul.f32.gmra.mxu0 %v195
      %v235 = vpop.f32.mrf.mxu0
      %v236 = vadd.f32 0.0, %v235
      %237 = vmatmul.f32.gmra.mxu0 %v198
      %v238 = vpop.f32.mrf.mxu0
      %v239 = vadd.f32 0.0, %v238
      %240 = vmatmul.f32.gmra.mxu0 %v201
      %v241 = vpop.f32.mrf.mxu0
      %v242 = vadd.f32 0.0, %v241
      %243 = vmatmul.f32.gmra.mxu0 %v204
      %v244 = vpop.f32.mrf.mxu0
      %v245 = vadd.f32 0.0, %v244
      %246 = vdwg.mxu0
      %v247 = vld [vmem:[%s2] sm:$0xff]
      %v248 = vld [vmem:[%s2 + $0x8] sm:$0xff]
      %v249 = vld [vmem:[%s2 + $0x10] sm:$0xff]
      %v250 = vld [vmem:[%s2 + $0x18] sm:$0xff]
      %v252 = vsel %vm181, %v247, 0
      %v255 = vsel %vm181, %v248, 0
      %v258 = vsel %vm181, %v249, 0
      %v261 = vsel %vm181, %v250, 0
      %263 = vmatpush.msra.mxu0 0.0
      %264 = vmatpush.msra.mxu0 0.0
      %265 = vmatpush.msra.mxu0 0.0
      %266 = vmatpush.msra.mxu0 0.0
      %267 = vmatpush.msra.mxu0 0.0
      %268 = vmatpush.msra.mxu0 0.0
      %269 = vmatpush.msra.mxu0 0.0
      %270 = vmatpush.msra.mxu0 0.0
      %271 = vmatpush.msra.mxu0 0.0
      %272 = vmatpush.msra.mxu0 0.0
      %273 = vmatpush.msra.mxu0 0.0
      %274 = vmatpush.msra.mxu0 0.0
      %275 = vmatpush.msra.mxu0 0.0
      %276 = vmatpush.msra.mxu0 0.0
      %277 = vmatpush.msra.mxu0 %v227
      %278 = vmatpush.msra.mxu0 %v224
      %279 = vmatmul.f32.gmra.mxu0 %v252
      %v280 = vpop.f32.mrf.mxu0
      %v281 = vadd.f32 0.0, %v280
      %282 = vmatmul.f32.gmra.mxu0 %v255
      %v283 = vpop.f32.mrf.mxu0
      %v284 = vadd.f32 0.0, %v283
      %285 = vmatmul.f32.gmra.mxu0 %v258
      %v286 = vpop.f32.mrf.mxu0
      %v287 = vadd.f32 0.0, %v286
      %288 = vmatmul.f32.gmra.mxu0 %v261
      %v289 = vpop.f32.mrf.mxu0
      %v290 = vadd.f32 0.0, %v289
      %291 = vdwg.mxu0
      %vm292 = vcmask 261120
      %293 = vst.msk [vmem:[%s170] sm:$0xff] %vm292, %v281
      %294 = vst.msk [vmem:[%s170 + $0x8] sm:$0xff] %vm292, %v284
      %295 = vst.msk [vmem:[%s170 + $0x10] sm:$0xff] %vm292, %v287
      %296 = vst.msk [vmem:[%s170 + $0x18] sm:$0xff] %vm292, %v290
      %v297 = vld [vmem:[%s2] sm:$0xff]
      %v298 = vld [vmem:[%s2 + $0x8] sm:$0xff]
      %v299 = vld [vmem:[%s2 + $0x10] sm:$0xff]
      %v300 = vld [vmem:[%s2 + $0x18] sm:$0xff]
      %v302 = vsel %vm181, %v297, 0
      %v305 = vsel %vm181, %v298, 0
      %v308 = vsel %vm181, %v299, 0
      %v311 = vsel %vm181, %v300, 0
      %313 = vmatpush.msra.mxu0 0.0
      %314 = vmatpush.msra.mxu0 0.0
      %315 = vmatpush.msra.mxu0 0.0
      %316 = vmatpush.msra.mxu0 0.0
      %317 = vmatpush.msra.mxu0 0.0
      %318 = vmatpush.msra.mxu0 0.0
      %319 = vmatpush.msra.mxu0 0.0
      %320 = vmatpush.msra.mxu0 0.0
      %321 = vmatpush.msra.mxu0 0.0
      %322 = vmatpush.msra.mxu0 0.0
      %323 = vmatpush.msra.mxu0 0.0
      %324 = vmatpush.msra.mxu0 0.0
      %325 = vmatpush.msra.mxu0 0.0
      %326 = vmatpush.msra.mxu0 0.0
      %327 = vmatpush.msra.mxu0 %v233
      %328 = vmatpush.msra.mxu0 %v230
      %329 = vmatmul.f32.gmra.mxu0 %v302
      %v330 = vpop.f32.mrf.mxu0
      %v331 = vadd.f32 0.0, %v330
      %332 = vmatmul.f32.gmra.mxu0 %v305
      %v333 = vpop.f32.mrf.mxu0
      %v334 = vadd.f32 0.0, %v333
      %335 = vmatmul.f32.gmra.mxu0 %v308
      %v336 = vpop.f32.mrf.mxu0
      %v337 = vadd.f32 0.0, %v336
      %338 = vmatmul.f32.gmra.mxu0 %v311
      %v339 = vpop.f32.mrf.mxu0
      %v340 = vadd.f32 0.0, %v339
      %341 = vdwg.mxu0
      %342 = vst.msk [vmem:[%s170 + $0x20] sm:$0xff] %vm292, %v331
      %343 = vst.msk [vmem:[%s170 + $0x28] sm:$0xff] %vm292, %v334
      %344 = vst.msk [vmem:[%s170 + $0x30] sm:$0xff] %vm292, %v337
      %345 = vst.msk [vmem:[%s170 + $0x38] sm:$0xff] %vm292, %v340
      %v346 = vld [vmem:[%s2] sm:$0xff]
      %v347 = vld [vmem:[%s2 + $0x8] sm:$0xff]
      %v348 = vld [vmem:[%s2 + $0x10] sm:$0xff]
      %v349 = vld [vmem:[%s2 + $0x18] sm:$0xff]
      %v351 = vsel %vm181, %v346, 0
      %v354 = vsel %vm181, %v347, 0
      %v357 = vsel %vm181, %v348, 0
      %v360 = vsel %vm181, %v349, 0
      %362 = vmatpush.msra.mxu0 0.0
      %363 = vmatpush.msra.mxu0 0.0
      %364 = vmatpush.msra.mxu0 0.0
      %365 = vmatpush.msra.mxu0 0.0
      %366 = vmatpush.msra.mxu0 0.0
      %367 = vmatpush.msra.mxu0 0.0
      %368 = vmatpush.msra.mxu0 0.0
      %369 = vmatpush.msra.mxu0 0.0
      %370 = vmatpush.msra.mxu0 0.0
      %371 = vmatpush.msra.mxu0 0.0
      %372 = vmatpush.msra.mxu0 0.0
      %373 = vmatpush.msra.mxu0 0.0
      %374 = vmatpush.msra.mxu0 0.0
      %375 = vmatpush.msra.mxu0 0.0
      %376 = vmatpush.msra.mxu0 %v239
      %377 = vmatpush.msra.mxu0 %v236
      %378 = vmatmul.f32.gmra.mxu0 %v351
      %v379 = vpop.f32.mrf.mxu0
      %v380 = vadd.f32 0.0, %v379
      %381 = vmatmul.f32.gmra.mxu0 %v354
      %v382 = vpop.f32.mrf.mxu0
      %v383 = vadd.f32 0.0, %v382
      %384 = vmatmul.f32.gmra.mxu0 %v357
      %v385 = vpop.f32.mrf.mxu0
      %v386 = vadd.f32 0.0, %v385
      %387 = vmatmul.f32.gmra.mxu0 %v360
      %v388 = vpop.f32.mrf.mxu0
      %v389 = vadd.f32 0.0, %v388
      %390 = vdwg.mxu0
      %391 = vst.msk [vmem:[%s170 + $0x40] sm:$0xff] %vm292, %v380
      %392 = vst.msk [vmem:[%s170 + $0x48] sm:$0xff] %vm292, %v383
      %393 = vst.msk [vmem:[%s170 + $0x50] sm:$0xff] %vm292, %v386
      %394 = vst.msk [vmem:[%s170 + $0x58] sm:$0xff] %vm292, %v389
      %v395 = vld [vmem:[%s2] sm:$0xff]
      %v396 = vld [vmem:[%s2 + $0x8] sm:$0xff]
      %v397 = vld [vmem:[%s2 + $0x10] sm:$0xff]
      %v398 = vld [vmem:[%s2 + $0x18] sm:$0xff]
      %v400 = vsel %vm181, %v395, 0
      %v403 = vsel %vm181, %v396, 0
      %v406 = vsel %vm181, %v397, 0
      %v409 = vsel %vm181, %v398, 0
      %411 = vmatpush.msra.mxu0 0.0
      %412 = vmatpush.msra.mxu0 0.0
      %413 = vmatpush.msra.mxu0 0.0
      %414 = vmatpush.msra.mxu0 0.0
      %415 = vmatpush.msra.mxu0 0.0
      %416 = vmatpush.msra.mxu0 0.0
      %417 = vmatpush.msra.mxu0 0.0
      %418 = vmatpush.msra.mxu0 0.0
      %419 = vmatpush.msra.mxu0 0.0
      %420 = vmatpush.msra.mxu0 0.0
      %421 = vmatpush.msra.mxu0 0.0
      %422 = vmatpush.msra.mxu0 0.0
      %423 = vmatpush.msra.mxu0 0.0
      %424 = vmatpush.msra.mxu0 0.0
      %425 = vmatpush.msra.mxu0 %v245
      %426 = vmatpush.msra.mxu0 %v242
      %427 = vmatmul.f32.gmra.mxu0 %v400
      %v428 = vpop.f32.mrf.mxu0
      %v429 = vadd.f32 0.0, %v428
      %430 = vmatmul.f32.gmra.mxu0 %v403
      %v431 = vpop.f32.mrf.mxu0
      %v432 = vadd.f32 0.0, %v431
      %433 = vmatmul.f32.gmra.mxu0 %v406
      %v434 = vpop.f32.mrf.mxu0
      %v435 = vadd.f32 0.0, %v434
      %436 = vmatmul.f32.gmra.mxu0 %v409
      %v437 = vpop.f32.mrf.mxu0
      %v438 = vadd.f32 0.0, %v437
      %439 = vdwg.mxu0
      %440 = vst.msk [vmem:[%s170 + $0x60] sm:$0xff] %vm292, %v429
      %441 = vst.msk [vmem:[%s170 + $0x68] sm:$0xff] %vm292, %v432
      %442 = vst.msk [vmem:[%s170 + $0x70] sm:$0xff] %vm292, %v435
      %443 = vst.msk [vmem:[%s170 + $0x78] sm:$0xff] %vm292, %v438
      %p444 = scmp.lt.s32.totalorder %s14, 1
      %s445 = scalar_select %p444, %s14, 1
      %s446 = smul.addr %s445, 16
      %s447 = smul.addr %s446, 8
      %s448 = scalar_lea.vmem %s3, %s447
      // Predicated region
      $region33: #{tpu_custom_call.1} parent=31 // pred_check
        %p449 = pneg %p100
      $region34: #{tpu_custom_call.1} parent=31 // pred_check_branch
        %451 = sbr.rel (%p449) target = $region36
      $region35: #{tpu_custom_call.1} parent=31 // pred_region
        _
      $region36: #{tpu_custom_call.1} parent=31 // pred_fallthru
        _
    $region32: #{tpu_custom_call.1} parent=5 // pred_fallthru
      _
    %p452 = scmp.le.s32.totalorder 2, %s9
    // Predicated region
    $region37: #{tpu_custom_call.1} parent=5 // pred_check
      %p453 = pneg %p452
    $region38: #{tpu_custom_call.1} parent=5 // pred_check_branch
      %455 = sbr.rel (%p453) target = $region40
    $region39: #{tpu_custom_call.1} parent=5 // pred_region
      %s456 = ssub.s32 %s9, 2
      // Predicated region
      $region41: #{tpu_custom_call.1} parent=39 // pred_check
        %p457 = pneg %p106
      $region42: #{tpu_custom_call.1} parent=39 // pred_check_branch
        %459 = sbr.rel (%p457) target = $region44
      $region43: #{tpu_custom_call.1} parent=39 // pred_region
        %p460 = scmp.lt.s32.totalorder %s15, 1
        %s461 = scalar_select %p460, %s15, 1
        %s462 = smul.addr %s461, 16
        %s463 = smul.addr %s462, 8
        %s464 = scalar_lea.vmem %s3, %s463
      $region44: #{tpu_custom_call.1} parent=39 // pred_fallthru
        _
    $region40: #{tpu_custom_call.1} parent=5 // pred_fallthru
      _
  $region6: #{tpu_custom_call.1} parent=0 // loop_footer
    %s13 = sadd.s32 1, %s9
  $region7: #{tpu_custom_call.1} parent=0 // loop_footer_branch
    %8 = sbr.rel target = $region3
  $region8: #{tpu_custom_call.1} parent=0 // loop_exit
    _

</llo_original>
